<compile_context>
chip_gen: v5e
topology: v5e:2x2
jax: 0.10.0
libtpu: 0.0.40
codegen_flags: <defaults>
</compile_context>

<pallas_src>
import jax
import jax.numpy as jnp
from jax.experimental import pallas as pl
from jax.experimental.pallas import tpu as pltpu

N_CHANNELS = 10   # conv output channels (n_channels in the torch script)
N_CLASSES = 4     # Linear(10 * 28, 4)
KSIZE = 3         # Conv1d kernel size
NPAD = 128        # lane-dense padded FC output width


def cnn_kernel(x_ref, w1_ref, w2_ref, o_ref):
    """One batch tile of the fused Conv1d+ReLU+Linear forward.

    x_ref  : (TB, Cin*L + 1)        bf16  flattened input + ones column
    w1_ref : (Cin*L + 1, Cout*Lout) bf16  conv as structured matmul (+ bias row)
    w2_ref : (Cout*Lout, NPAD)      bf16  fc weight, lane-dense zero-padded
    o_ref  : (TB, NPAD)             f32   padded logits (fc bias added outside)
    """
    # Conv1d + bias in a single MXU matmul, f32 accumulation.
    h = jnp.dot(x_ref[...], w1_ref[...], preferred_element_type=jnp.float32)
    h = jnp.maximum(h, 0.0)                      # ReLU in f32 (VPU)
    # Linear over the fused (c, t) = 280 axis: one MXU matmul, f32 accumulation.
    o_ref[...] = jnp.dot(h.astype(jnp.bfloat16), w2_ref[...],
                         preferred_element_type=jnp.float32).astype(o_ref.dtype)


def prepare_cnn_params(conv_w, conv_b, fc_w, fc_b):
    """Pure function of the parameters — build once at model load and reuse."""
    Cout, Cin, K = conv_w.shape
    Nout, Fin = fc_w.shape
    Lout = Fin // Cout
    L = Lout + K - 1
    assert Fin == Cout * Lout
    assert Nout <= NPAD

    # Shift matrices E[k, l, t] = 1 iff l == t + k  (valid cross-correlation).
    E = jnp.stack([jnp.eye(L, Lout, -k, dtype=jnp.float32) for k in range(K)])
    # W1[ci, l, c, t] = conv_w[c, ci, k] iff l == t + k
    w1 = jnp.einsum("cik,klt->ilct", conv_w.astype(jnp.float32), E)
    w1 = w1.reshape(Cin * L, Cout * Lout)
    # Fold the conv bias as an extra weight row (paired with a ones column in x).
    bias_row = jnp.repeat(conv_b.astype(jnp.float32), Lout)[None, :]
    w1 = jnp.concatenate([w1, bias_row], axis=0).astype(jnp.bfloat16)   # (Cin*L+1, 280)

    # FC weight: torch flattens conv output c-major/t-minor = our column order.
    w2 = jnp.pad(fc_w.T.astype(jnp.float32),
                 ((0, 0), (0, NPAD - Nout))).astype(jnp.bfloat16)        # (280, NPAD)
    fb = fc_b.astype(jnp.float32)                                        # (Nout,)
    return w1, w2, fb


def cnn_forward(x_ncw, w1, w2, fb):
    """x_ncw: (B, Cin, L) float32 — same layout as the PyTorch module."""
    B, Cin, L = x_ncw.shape
    KINP = Cin * L + 1
    assert w1.shape[0] == KINP
    F = w1.shape[1]          # Cout * Lout = 280
    NP = w2.shape[1]         # NPAD
    Nout = fb.shape[0]

    # Per-call input prep: flatten, cast to bf16, append ones column (conv bias).
    x_flat = x_ncw.reshape(B, Cin * L).astype(jnp.bfloat16)
    x_aug = jnp.concatenate([x_flat, jnp.ones((B, 1), jnp.bfloat16)], axis=1)

    # Batch tiling: whole batch per step when small, 128-row tiles otherwise
    # (pad B to a multiple of TB so odd batch sizes are handled).
    TB = B if B <= 128 else 128
    Bp = ((B + TB - 1) // TB) * TB
    if Bp != B:
        x_aug = jnp.pad(x_aug, ((0, Bp - B), (0, 0)))

    out_padded = pl.pallas_call(
        cnn_kernel,
        out_shape=jax.ShapeDtypeStruct((Bp, NP), jnp.float32),
        grid=(Bp // TB,),
        in_specs=[
            pl.BlockSpec((TB, KINP), lambda i: (i, 0)),
            pl.BlockSpec((KINP, F), lambda i: (0, 0)),
            pl.BlockSpec((F, NP), lambda i: (0, 0)),
        ],
        out_specs=pl.BlockSpec((TB, NP), lambda i: (i, 0)),
        compiler_params=pltpu.CompilerParams(
            dimension_semantics=("parallel",)),
    )(x_aug, w1, w2)

    # Drop batch/lane padding (free XLA slice) and add the 4-scalar fc bias.
    return out_padded[:B, :Nout] + fb[None, :]


def cnn_reference(x_ncw, conv_w, conv_b, fc_w, fc_b):
    """Pure-JAX f32 replica of the PyTorch forward for validation."""
    B, Cin, L = x_ncw.shape
    Cout, _, K = conv_w.shape
    Lout = L - K + 1
    conv = jnp.zeros((B, Cout, Lout), jnp.float32)
    for k in range(K):
        conv = conv + jnp.einsum("bcl,oc->bol",
                                 x_ncw[:, :, k:k + Lout], conv_w[:, :, k])
    conv = conv + conv_b[None, :, None]
    h = jnp.maximum(conv, 0.0).reshape(B, -1)            # torch .reshape(batch, -1)
    return h @ fc_w.T + fc_b[None, :]


if __name__ == "__main__":
    # RacketSports: 6 input channels, series length 30 -> Lout = 28, fc in = 280
    B, Cin, L = 2, 6, 30
    Lout = L - KSIZE + 1

    key = jax.random.PRNGKey(0)
    ks = jax.random.split(key, 5)
    conv_w = 0.1 * jax.random.normal(ks[0], (N_CHANNELS, Cin, KSIZE), jnp.float32)
    conv_b = 0.1 * jax.random.normal(ks[1], (N_CHANNELS,), jnp.float32)
    fc_w = 0.1 * jax.random.normal(ks[2], (N_CLASSES, N_CHANNELS * Lout), jnp.float32)
    fc_b = 0.1 * jax.random.normal(ks[3], (N_CLASSES,), jnp.float32)
    x = jax.random.normal(ks[4], (B, Cin, L), jnp.float32)

    # Weight prep is parameter-only: build once, reuse for every forward.
    w1, w2, fb = prepare_cnn_params(conv_w, conv_b, fc_w, fc_b)

    out = jax.block_until_ready(cnn_forward(x, w1, w2, fb))
    ref = cnn_reference(x, conv_w, conv_b, fc_w, fc_b)

    assert out.shape == (B, N_CLASSES), out.shape
    # bf16 MXU operands (f32 accumulation) -> looser tolerance than pure f32.
    assert jnp.allclose(out, ref, atol=5e-2, rtol=5e-2), (out, ref)
    print("KERNEL_OK")
</pallas_src>

<mosaic_0001>
module attributes {stable_mosaic.version = 11 : i64} {
  func.func @cnn_kernel(%arg0: i32, %arg1: memref<2x181xbf16, #tpu.memory_space<vmem>>, %arg2: memref<181x280xbf16, #tpu.memory_space<vmem>>, %arg3: memref<280x128xbf16, #tpu.memory_space<vmem>>, %arg4: memref<2x128xf32, #tpu.memory_space<vmem>>) attributes {dimension_semantics = [#tpu.dimension_semantics<parallel>], iteration_bounds = array<i64: 1>, scalar_prefetch = 0 : i64, scratch_operands = 0 : i64, tpu.core_type = #tpu.core_type<tc>, window_params = [{transform_indices = @transform_0, window_bounds = array<i64: 2, 181>}, {pipeline_mode = #tpu.pipeline_mode<synchronous>, transform_indices = @transform_1, window_bounds = array<i64: 181, 280>}, {pipeline_mode = #tpu.pipeline_mode<synchronous>, transform_indices = @transform_2, window_bounds = array<i64: 280, 128>}, {transform_indices = @transform_3, window_bounds = array<i64: 2, 128>}]} {
    %c0 = arith.constant 0 : index
    %c0_0 = arith.constant 0 : index
    %0 = vector.load %arg1[%c0, %c0_0] : memref<2x181xbf16, #tpu.memory_space<vmem>>, vector<2x181xbf16>
    %c0_1 = arith.constant 0 : index
    %c0_2 = arith.constant 0 : index
    %1 = vector.load %arg2[%c0_1, %c0_2] : memref<181x280xbf16, #tpu.memory_space<vmem>>, vector<181x280xbf16>
    %cst = arith.constant dense<0.000000e+00> : vector<2x280xf32>
    %2 = tpu.matmul %0, %1, %cst {dimension_numbers = #tpu.dot_dimension_numbers<[1], [0], [0], [1], [0, 0, 1, 1], [], []>} : vector<2x181xbf16>, vector<181x280xbf16>, vector<2x280xf32> -> vector<2x280xf32>
    %cst_3 = arith.constant 0.000000e+00 : f32
    %3 = vector.broadcast %cst_3 : f32 to vector<2x280xf32>
    %4 = arith.maximumf %2, %3 : vector<2x280xf32>
    %5 = arith.truncf %4 : vector<2x280xf32> to vector<2x280xbf16>
    %c0_4 = arith.constant 0 : index
    %c0_5 = arith.constant 0 : index
    %6 = vector.load %arg3[%c0_4, %c0_5] : memref<280x128xbf16, #tpu.memory_space<vmem>>, vector<280x128xbf16>
    %cst_6 = arith.constant dense<0.000000e+00> : vector<2x128xf32>
    %7 = tpu.matmul %5, %6, %cst_6 {dimension_numbers = #tpu.dot_dimension_numbers<[1], [0], [0], [1], [0, 0, 1, 1], [], []>} : vector<2x280xbf16>, vector<280x128xbf16>, vector<2x128xf32> -> vector<2x128xf32>
    %c0_7 = arith.constant 0 : index
    %c0_8 = arith.constant 0 : index
    %8 = vector.load %arg4[%c0_7, %c0_8] : memref<2x128xf32, #tpu.memory_space<vmem>>, vector<2x128xf32>
    tpu.vector_store %arg4[%c0_7, %c0_8], %7 {strides = array<i32>} : memref<2x128xf32, #tpu.memory_space<vmem>>, vector<2x128xf32>,
    return
  }
  func.func @transform_0(%arg0: i32) -> (i32, i32) {
    %c0_i32 = arith.constant 0 : i32
    %c0_i32_0 = arith.constant 0 : i32
    return %arg0, %c0_i32 : i32, i32
  }
  func.func @transform_1(%arg0: i32) -> (i32, i32) {
    %c0_i32 = arith.constant 0 : i32
    %c0_i32_0 = arith.constant 0 : i32
    %c0_i32_1 = arith.constant 0 : i32
    return %c0_i32, %c0_i32_0 : i32, i32
  }
  func.func @transform_2(%arg0: i32) -> (i32, i32) {
    %c0_i32 = arith.constant 0 : i32
    %c0_i32_0 = arith.constant 0 : i32
    %c0_i32_1 = arith.constant 0 : i32
    return %c0_i32, %c0_i32_0 : i32, i32
  }
  func.func @transform_3(%arg0: i32) -> (i32, i32) {
    %c0_i32 = arith.constant 0 : i32
    %c0_i32_0 = arith.constant 0 : i32
    return %arg0, %c0_i32 : i32, i32
  }
}

</mosaic_0001>

<llo_original>
// kernel: tpu_custom_call.1
$region0: #{tpu_custom_call.1}
  #allocation0 [shape = 'u32[]', space=smem, size = 0x4, offset = 0x4, fixed_abs, tag = 'smem constant byte address 0x4 - core index']
  #allocation1 [shape = 'u32[72,128]{1,0:T(1,128)}', space=vmem, size = 0x9000, scoped, tag = 'internal scratch']
  %s0 = inlined_call_operand.hbm [shape: bf16[2,181], index: 0, kind: input, shape index: {}]
  %s1 = inlined_call_operand.hbm [shape: bf16[181,280], index: 1, kind: input, shape index: {}]
  %s2 = inlined_call_operand.hbm [shape: bf16[280,128], index: 2, kind: input, shape index: {}]
  %s3 = inlined_call_operand.hbm [shape: f32[2,128], index: 3, kind: output, shape index: {}]
  %s4 = sld [smem:[#allocation0]]
  $region34: #{tpu_custom_call.1} parent=0
    _
  %s6 = ssub.s32 1, %s4
  %s7 = scalar_select 0, %s6, %s4
  $region1: #{tpu_custom_call.1} parent=0
    #allocation2 [shape = 'u8[1024]{0}', space=vmem, size = 0x400, scoped, tag = 'input window, operand 0, single buffered']
    #allocation3 [shape = 's32[1]{0}', space=sflag, size = 0x4, scoped, tag = 'scoped memory for tpu_custom_call.1']
    #allocation4 [shape = 's32[1]{0}', space=sflag, size = 0x4, scoped, tag = 'scoped memory for tpu_custom_call.1']
    #allocation5 [shape = 'u8[141312]{0}', space=vmem, size = 0x22800, scoped, tag = 'input window, operand 1, single buffered']
    #allocation6 [shape = 's32[1]{0}', space=sflag, size = 0x4, scoped, tag = 'scoped memory for tpu_custom_call.1']
    #allocation7 [shape = 'u8[71680]{0}', space=vmem, size = 0x11800, scoped, tag = 'input window, operand 2, single buffered']
    #allocation8 [shape = 'u8[1024]{0}', space=vmem, size = 0x400, scoped, tag = 'output window, operand 0, single buffered']
    %8 = vsyncpa [#allocation3], 0
    %9 = vsyncpa [#allocation6], 0
    %10 = vsyncpa [#allocation4], 0
    // Predicated region
    $region2: #{tpu_custom_call.1} parent=1 // pred_check
      _
    $region3: #{tpu_custom_call.1} parent=1 // pred_check_branch
      %12 = sbr.rel (0) target = $region5
    $region4: #{tpu_custom_call.1} parent=1 // pred_region
      %14 = vsyncadd [#allocation3], 0
      %s16 = sshll.u32 %s0, 4
      %s17 = int_to_ptr.hbm [resolvable:$true] %s16
      %s18 = sshll.u32 [#allocation2], 4
      %s19 = int_to_ptr.vmem [resolvable:$true] %s18
      %21 = dma.hbm_to_vmem [thread:$0]  %s17, 32, %s19, [#allocation3]
    $region5: #{tpu_custom_call.1} parent=1 // pred_fallthru
      _
    // Predicated region
    $region6: #{tpu_custom_call.1} parent=1 // pred_check
      _
    $region7: #{tpu_custom_call.1} parent=1 // pred_check_branch
      %23 = sbr.rel (0) target = $region9
    $region8: #{tpu_custom_call.1} parent=1 // pred_region
      %25 = vsyncadd [#allocation6], 0
      %s26 = sshll.u32 %s1, 4
      %s27 = int_to_ptr.hbm [resolvable:$true] %s26
      %s28 = sshll.u32 [#allocation5], 4
      %s29 = int_to_ptr.vmem [resolvable:$true] %s28
      %34 = dma.hbm_to_vmem [thread:$0]  %s27, 4416, %s29, [#allocation6], 192, 192, 12
    $region9: #{tpu_custom_call.1} parent=1 // pred_fallthru
      _
    // Predicated region
    $region10: #{tpu_custom_call.1} parent=1 // pred_check
      _
    $region11: #{tpu_custom_call.1} parent=1 // pred_check_branch
      %36 = sbr.rel (0) target = $region13
    $region12: #{tpu_custom_call.1} parent=1 // pred_region
      %38 = vsyncadd [#allocation6], 0
      %s39 = sshll.u32 %s2, 4
      %s40 = int_to_ptr.hbm [resolvable:$true] %s39
      %s41 = sshll.u32 [#allocation7], 4
      %s42 = int_to_ptr.vmem [resolvable:$true] %s41
      %47 = dma.hbm_to_vmem [thread:$0]  %s40, 2240, %s42, [#allocation6], 64, 64, 4
    $region13: #{tpu_custom_call.1} parent=1 // pred_fallthru
      _
    // Predicated region
    $region14: #{tpu_custom_call.1} parent=1 // pred_check
      _
    $region15: #{tpu_custom_call.1} parent=1 // pred_check_branch
      %49 = sbr.rel (0) target = $region17
    $region16: #{tpu_custom_call.1} parent=1 // pred_region
      %51 = dma.done [#allocation3], 32
    $region17: #{tpu_custom_call.1} parent=1 // pred_fallthru
      _
    // Predicated region
    $region18: #{tpu_custom_call.1} parent=1 // pred_check
      _
    $region19: #{tpu_custom_call.1} parent=1 // pred_check_branch
      %53 = sbr.rel (0) target = $region21
    $region20: #{tpu_custom_call.1} parent=1 // pred_region
      %55 = dma.done [#allocation6], 4416
    $region21: #{tpu_custom_call.1} parent=1 // pred_fallthru
      _
    // Predicated region
    $region22: #{tpu_custom_call.1} parent=1 // pred_check
      _
    $region23: #{tpu_custom_call.1} parent=1 // pred_check_branch
      %57 = sbr.rel (0) target = $region25
    $region24: #{tpu_custom_call.1} parent=1 // pred_region
      %59 = dma.done [#allocation6], 2240
    $region25: #{tpu_custom_call.1} parent=1 // pred_fallthru
      _
    %v61 = vld [vmem:[#allocation2] sm:$0x3]
    %v62 = vld [vmem:[#allocation5] sm:$0xff]
    %v63 = vld [vmem:[#allocation5 + $0x8] sm:$0xf]
    %v64 = vld [vmem:[#allocation5 + $0xc] sm:$0xff]
    %v65 = vld [vmem:[#allocation5 + $0x14] sm:$0xf]
    %v66 = vld [vmem:[#allocation5 + $0x18] sm:$0xff]
    %v67 = vld [vmem:[#allocation5 + $0x20] sm:$0xf]
    %v68 = vld [vmem:[#allocation5 + $0x24] sm:$0xff]
    %v69 = vld [vmem:[#allocation5 + $0x2c] sm:$0xf]
    %v70 = vld [vmem:[#allocation5 + $0x30] sm:$0xff]
    %v71 = vld [vmem:[#allocation5 + $0x38] sm:$0xf]
    %v72 = vld [vmem:[#allocation5 + $0x3c] sm:$0xff]
    %v73 = vld [vmem:[#allocation5 + $0x44] sm:$0xf]
    %v74 = vld [vmem:[#allocation5 + $0x48] sm:$0xff]
    %v75 = vld [vmem:[#allocation5 + $0x50] sm:$0xf]
    %v76 = vld [vmem:[#allocation5 + $0x54] sm:$0xff]
    %v77 = vld [vmem:[#allocation5 + $0x5c] sm:$0xf]
    %v78 = vld [vmem:[#allocation5 + $0x60] sm:$0xff]
    %v79 = vld [vmem:[#allocation5 + $0x68] sm:$0xf]
    %v80 = vld [vmem:[#allocation5 + $0x6c] sm:$0xff]
    %v81 = vld [vmem:[#allocation5 + $0x74] sm:$0xf]
    %v82 = vld [vmem:[#allocation5 + $0x78] sm:$0xff]
    %v83 = vld [vmem:[#allocation5 + $0x80] sm:$0xf]
    %v84 = vld [vmem:[#allocation5 + $0x84] sm:$0xff]
    %v85 = vld [vmem:[#allocation5 + $0x8c] sm:$0xf]
    %v86 = vld [vmem:[#allocation5 + $0x90] sm:$0xff]
    %v87 = vld [vmem:[#allocation5 + $0x98] sm:$0xf]
    %v88 = vld [vmem:[#allocation5 + $0x9c] sm:$0xff]
    %v89 = vld [vmem:[#allocation5 + $0xa4] sm:$0xf]
    %v90 = vld [vmem:[#allocation5 + $0xa8] sm:$0xff]
    %v91 = vld [vmem:[#allocation5 + $0xb0] sm:$0xf]
    %v92 = vld [vmem:[#allocation5 + $0xb4] sm:$0xff]
    %v93 = vld [vmem:[#allocation5 + $0xbc] sm:$0xf]
    %v94 = vld [vmem:[#allocation5 + $0xc0] sm:$0xff]
    %v95 = vld [vmem:[#allocation5 + $0xc8] sm:$0xf]
    %v96 = vld [vmem:[#allocation5 + $0xcc] sm:$0xff]
    %v97 = vld [vmem:[#allocation5 + $0xd4] sm:$0xf]
    %v98 = vld [vmem:[#allocation5 + $0xd8] sm:$0xff]
    %v99 = vld [vmem:[#allocation5 + $0xe0] sm:$0xf]
    %v100 = vld [vmem:[#allocation5 + $0xe4] sm:$0xff]
    %v101 = vld [vmem:[#allocation5 + $0xec] sm:$0xf]
    %v102 = vld [vmem:[#allocation5 + $0xf0] sm:$0xff]
    %v103 = vld [vmem:[#allocation5 + $0xf8] sm:$0xf]
    %v104 = vld [vmem:[#allocation5 + $0xfc] sm:$0xff]
    %v105 = vld [vmem:[#allocation5 + $0x104] sm:$0xf]
    %v106 = vld [vmem:[#allocation5 + $0x108] sm:$0x77]
    %v107 = vld [vmem:[#allocation5 + $0x110] sm:$0x7]
    %109 = vst [vmem:[#allocation1] ss:$9 sm:$0xff] %v61
    %v110 = vld [vmem:[#allocation1] sm:$0xff]
    %v111 = vld [vmem:[#allocation1 + $0x9] sm:$0xff]
    %v159 = vunpack.c.l.b16 %v62
    %v160 = vunpack.c.h.b16 %v62
    %v161 = vunpack.c.l.b16 %v63
    %v162 = vunpack.c.l.b16 %v64
    %v163 = vunpack.c.h.b16 %v64
    %v164 = vunpack.c.l.b16 %v65
    %v165 = vunpack.c.l.b16 %v66
    %v166 = vunpack.c.h.b16 %v66
    %v167 = vunpack.c.l.b16 %v67
    %v168 = vunpack.c.l.b16 %v68
    %v169 = vunpack.c.h.b16 %v68
    %v170 = vunpack.c.l.b16 %v69
    %v171 = vunpack.c.l.b16 %v70
    %v172 = vunpack.c.h.b16 %v70
    %v173 = vunpack.c.l.b16 %v71
    %v174 = vunpack.c.l.b16 %v72
    %v175 = vunpack.c.h.b16 %v72
    %v176 = vunpack.c.l.b16 %v73
    %v177 = vunpack.c.l.b16 %v74
    %v178 = vunpack.c.h.b16 %v74
    %v179 = vunpack.c.l.b16 %v75
    %v180 = vunpack.c.l.b16 %v76
    %v181 = vunpack.c.h.b16 %v76
    %v182 = vunpack.c.l.b16 %v77
    %v183 = vunpack.c.l.b16 %v78
    %v184 = vunpack.c.h.b16 %v78
    %v185 = vunpack.c.l.b16 %v79
    %v186 = vunpack.c.l.b16 %v80
    %v187 = vunpack.c.h.b16 %v80
    %v188 = vunpack.c.l.b16 %v81
    %v189 = vunpack.c.l.b16 %v82
    %v190 = vunpack.c.h.b16 %v82
    %v191 = vunpack.c.l.b16 %v83
    %v192 = vunpack.c.l.b16 %v84
    %v193 = vunpack.c.h.b16 %v84
    %v194 = vunpack.c.l.b16 %v85
    %v195 = vunpack.c.l.b16 %v86
    %v196 = vunpack.c.h.b16 %v86
    %v197 = vunpack.c.l.b16 %v87
    %v198 = vunpack.c.l.b16 %v88
    %v199 = vunpack.c.h.b16 %v88
    %v200 = vunpack.c.l.b16 %v89
    %v201 = vunpack.c.l.b16 %v90
    %v202 = vunpack.c.h.b16 %v90
    %v203 = vunpack.c.l.b16 %v91
    %v204 = vunpack.c.l.b16 %v92
    %v205 = vunpack.c.h.b16 %v92
    %v206 = vunpack.c.l.b16 %v93
    %v207 = vunpack.c.l.b16 %v94
    %v208 = vunpack.c.h.b16 %v94
    %v209 = vunpack.c.l.b16 %v95
    %v210 = vunpack.c.l.b16 %v96
    %v211 = vunpack.c.h.b16 %v96
    %v212 = vunpack.c.l.b16 %v97
    %v213 = vunpack.c.l.b16 %v98
    %v214 = vunpack.c.h.b16 %v98
    %v215 = vunpack.c.l.b16 %v99
    %v216 = vunpack.c.l.b16 %v100
    %v217 = vunpack.c.h.b16 %v100
    %v218 = vunpack.c.l.b16 %v101
    %v219 = vunpack.c.l.b16 %v102
    %v220 = vunpack.c.h.b16 %v102
    %v221 = vunpack.c.l.b16 %v103
    %v222 = vunpack.c.l.b16 %v104
    %v223 = vunpack.c.h.b16 %v104
    %v224 = vunpack.c.l.b16 %v105
    %v225 = vunpack.c.l.b16 %v106
    %v226 = vunpack.c.h.b16 %v106
    %v227 = vunpack.c.l.b16 %v107
    %v228 = vpack.c.b16 %v162, %v159
    %v229 = vpack.c.b16 %v163, %v160
    %v230 = vpack.c.b16 %v164, %v161
    %v231 = vpack.c.b16 %v168, %v165
    %v232 = vpack.c.b16 %v169, %v166
    %v233 = vpack.c.b16 %v170, %v167
    %v234 = vpack.c.b16 %v174, %v171
    %v235 = vpack.c.b16 %v175, %v172
    %v236 = vpack.c.b16 %v176, %v173
    %v237 = vpack.c.b16 %v180, %v177
    %v238 = vpack.c.b16 %v181, %v178
    %v239 = vpack.c.b16 %v182, %v179
    %v240 = vpack.c.b16 %v186, %v183
    %v241 = vpack.c.b16 %v187, %v184
    %v242 = vpack.c.b16 %v188, %v185
    %v243 = vpack.c.b16 %v192, %v189
    %v244 = vpack.c.b16 %v193, %v190
    %v245 = vpack.c.b16 %v194, %v191
    %v246 = vpack.c.b16 %v198, %v195
    %v247 = vpack.c.b16 %v199, %v196
    %v248 = vpack.c.b16 %v200, %v197
    %v249 = vpack.c.b16 %v204, %v201
    %v250 = vpack.c.b16 %v205, %v202
    %v251 = vpack.c.b16 %v206, %v203
    %v252 = vpack.c.b16 %v210, %v207
    %v253 = vpack.c.b16 %v211, %v208
    %v254 = vpack.c.b16 %v212, %v209
    %v255 = vpack.c.b16 %v216, %v213
    %v256 = vpack.c.b16 %v217, %v214
    %v257 = vpack.c.b16 %v218, %v215
    %v258 = vpack.c.b16 %v222, %v219
    %v259 = vpack.c.b16 %v223, %v220
    %v260 = vpack.c.b16 %v224, %v221
    %v261 = vpack.c.b16 %v225, %v225
    %v262 = vpack.c.b16 %v226, %v226
    %v263 = vpack.c.b16 %v227, %v227
    %vm297 = vcmask 433152
    %v298 = vsel %vm297, %v111, 0
    %vm300 = vcmask 1041408
    %vm301 = vcmask 1042432
    %v302 = vsel %vm300, 4294967295, 65535
    %v303 = vsel %vm301, %v302, 0
    %v305 = vand.u32 %v261, %v303
    %v308 = vand.u32 %v262, %v303
    %v311 = vand.u32 %v263, %v303
    %313 = vmatpush.bf16.msra.mxu0 %v249
    %314 = vmatpush.bf16.msra.mxu0 %v246
    %315 = vmatpush.bf16.msra.mxu0 %v243
    %316 = vmatpush.bf16.msra.mxu0 %v240
    %317 = vmatpush.bf16.msra.mxu0 %v237
    %318 = vmatpush.bf16.msra.mxu0 %v234
    %319 = vmatpush.bf16.msra.mxu0 %v231
    %320 = vmatpush.bf16.msra.mxu0 %v228
    %321 = vmatmul.bf16.gmra.mxu0 %v110
    %v322 = vpop.f32.mrf.mxu0
    %v323 = vadd.f32 0.0, %v322
    %v324 = vpop.f32.mrf.mxu0
    %325 = vdwg.mxu0
    %326 = vmatpush.bf16.msra.mxu0 0
    %327 = vmatpush.bf16.msra.mxu0 0
    %328 = vmatpush.bf16.msra.mxu0 0
    %329 = vmatpush.bf16.msra.mxu0 0
    %330 = vmatpush.bf16.msra.mxu0 %v305
    %331 = vmatpush.bf16.msra.mxu0 %v258
    %332 = vmatpush.bf16.msra.mxu0 %v255
    %333 = vmatpush.bf16.msra.mxu0 %v252
    %334 = vmatmul.bf16.gmra.mxu0 %v298
    %v335 = vpop.f32.mrf.mxu0
    %v336 = vadd.f32 %v323, %v335
    %v337 = vpop.f32.mrf.mxu0
    %338 = vdwg.mxu0
    %339 = vmatpush.bf16.msra.mxu0 %v250
    %340 = vmatpush.bf16.msra.mxu0 %v247
    %341 = vmatpush.bf16.msra.mxu0 %v244
    %342 = vmatpush.bf16.msra.mxu0 %v241
    %343 = vmatpush.bf16.msra.mxu0 %v238
    %344 = vmatpush.bf16.msra.mxu0 %v235
    %345 = vmatpush.bf16.msra.mxu0 %v232
    %346 = vmatpush.bf16.msra.mxu0 %v229
    %347 = vmatmul.bf16.gmra.mxu0 %v110
    %v348 = vpop.f32.mrf.mxu0
    %v349 = vadd.f32 0.0, %v348
    %v350 = vpop.f32.mrf.mxu0
    %351 = vdwg.mxu0
    %352 = vmatpush.bf16.msra.mxu0 0
    %353 = vmatpush.bf16.msra.mxu0 0
    %354 = vmatpush.bf16.msra.mxu0 0
    %355 = vmatpush.bf16.msra.mxu0 0
    %356 = vmatpush.bf16.msra.mxu0 %v308
    %357 = vmatpush.bf16.msra.mxu0 %v259
    %358 = vmatpush.bf16.msra.mxu0 %v256
    %359 = vmatpush.bf16.msra.mxu0 %v253
    %360 = vmatmul.bf16.gmra.mxu0 %v298
    %v361 = vpop.f32.mrf.mxu0
    %v362 = vadd.f32 %v349, %v361
    %v363 = vpop.f32.mrf.mxu0
    %364 = vdwg.mxu0
    %365 = vmatpush.bf16.msra.mxu0 %v251
    %366 = vmatpush.bf16.msra.mxu0 %v248
    %367 = vmatpush.bf16.msra.mxu0 %v245
    %368 = vmatpush.bf16.msra.mxu0 %v242
    %369 = vmatpush.bf16.msra.mxu0 %v239
    %370 = vmatpush.bf16.msra.mxu0 %v236
    %371 = vmatpush.bf16.msra.mxu0 %v233
    %372 = vmatpush.bf16.msra.mxu0 %v230
    %373 = vmatmul.bf16.gmra.mxu0 %v110
    %v374 = vpop.f32.mrf.mxu0
    %v375 = vadd.f32 0.0, %v374
    %v376 = vpop.f32.mrf.mxu0
    %377 = vdwg.mxu0
    %378 = vmatpush.bf16.msra.mxu0 0
    %379 = vmatpush.bf16.msra.mxu0 0
    %380 = vmatpush.bf16.msra.mxu0 0
    %381 = vmatpush.bf16.msra.mxu0 0
    %382 = vmatpush.bf16.msra.mxu0 %v311
    %383 = vmatpush.bf16.msra.mxu0 %v260
    %384 = vmatpush.bf16.msra.mxu0 %v257
    %385 = vmatpush.bf16.msra.mxu0 %v254
    %386 = vmatmul.bf16.gmra.mxu0 %v298
    %v387 = vpop.f32.mrf.mxu0
    %v388 = vadd.f32 %v375, %v387
    %v389 = vpop.f32.mrf.mxu0
    %390 = vdwg.mxu0
    %v391 = vmax.f32 %v336, 0.0
    %v392 = vmax.f32 %v362, 0.0
    %v393 = vmax.f32 %v388, 0.0
    %v394 = vpack.c.bf16 %v391, %v391
    %v395 = vpack.c.bf16 %v392, %v392
    %v396 = vpack.c.bf16 %v393, %v393
    %v397 = vld [vmem:[#allocation7] sm:$0xf]
    %v398 = vld [vmem:[#allocation7 + $0x4] sm:$0xf]
    %v399 = vld [vmem:[#allocation7 + $0x8] sm:$0xf]
    %v400 = vld [vmem:[#allocation7 + $0xc] sm:$0xf]
    %v401 = vld [vmem:[#allocation7 + $0x10] sm:$0xf]
    %v402 = vld [vmem:[#allocation7 + $0x14] sm:$0xf]
    %v403 = vld [vmem:[#allocation7 + $0x18] sm:$0xf]
    %v404 = vld [vmem:[#allocation7 + $0x1c] sm:$0xf]
    %v405 = vld [vmem:[#allocation7 + $0x20] sm:$0xf]
    %v406 = vld [vmem:[#allocation7 + $0x24] sm:$0xf]
    %v407 = vld [vmem:[#allocation7 + $0x28] sm:$0xf]
    %v408 = vld [vmem:[#allocation7 + $0x2c] sm:$0xf]
    %v409 = vld [vmem:[#allocation7 + $0x30] sm:$0xf]
    %v410 = vld [vmem:[#allocation7 + $0x34] sm:$0xf]
    %v411 = vld [vmem:[#allocation7 + $0x38] sm:$0xf]
    %v412 = vld [vmem:[#allocation7 + $0x3c] sm:$0xf]
    %v413 = vld [vmem:[#allocation7 + $0x40] sm:$0xf]
    %v414 = vld [vmem:[#allocation7 + $0x44] sm:$0xf]
    %v415 = vld [vmem:[#allocation7 + $0x48] sm:$0xf]
    %v416 = vld [vmem:[#allocation7 + $0x4c] sm:$0xf]
    %v417 = vld [vmem:[#allocation7 + $0x50] sm:$0xf]
    %v418 = vld [vmem:[#allocation7 + $0x54] sm:$0xf]
    %v419 = vld [vmem:[#allocation7 + $0x58] sm:$0xf]
    %v420 = vld [vmem:[#allocation7 + $0x5c] sm:$0xf]
    %v421 = vld [vmem:[#allocation7 + $0x60] sm:$0xf]
    %v422 = vld [vmem:[#allocation7 + $0x64] sm:$0xf]
    %v423 = vld [vmem:[#allocation7 + $0x68] sm:$0xf]
    %v424 = vld [vmem:[#allocation7 + $0x6c] sm:$0xf]
    %v425 = vld [vmem:[#allocation7 + $0x70] sm:$0xf]
    %v426 = vld [vmem:[#allocation7 + $0x74] sm:$0xf]
    %v427 = vld [vmem:[#allocation7 + $0x78] sm:$0xf]
    %v428 = vld [vmem:[#allocation7 + $0x7c] sm:$0xf]
    %v429 = vld [vmem:[#allocation7 + $0x80] sm:$0xf]
    %v430 = vld [vmem:[#allocation7 + $0x84] sm:$0xf]
    %v431 = vld [vmem:[#allocation7 + $0x88] sm:$0xf]
    %v467 = vunpack.c.l.b16 %v397
    %v468 = vunpack.c.l.b16 %v398
    %v469 = vunpack.c.l.b16 %v399
    %v470 = vunpack.c.l.b16 %v400
    %v471 = vunpack.c.l.b16 %v401
    %v472 = vunpack.c.l.b16 %v402
    %v473 = vunpack.c.l.b16 %v403
    %v474 = vunpack.c.l.b16 %v404
    %v475 = vunpack.c.l.b16 %v405
    %v476 = vunpack.c.l.b16 %v406
    %v477 = vunpack.c.l.b16 %v407
    %v478 = vunpack.c.l.b16 %v408
    %v479 = vunpack.c.l.b16 %v409
    %v480 = vunpack.c.l.b16 %v410
    %v481 = vunpack.c.l.b16 %v411
    %v482 = vunpack.c.l.b16 %v412
    %v483 = vunpack.c.l.b16 %v413
    %v484 = vunpack.c.l.b16 %v414
    %v485 = vunpack.c.l.b16 %v415
    %v486 = vunpack.c.l.b16 %v416
    %v487 = vunpack.c.l.b16 %v417
    %v488 = vunpack.c.l.b16 %v418
    %v489 = vunpack.c.l.b16 %v419
    %v490 = vunpack.c.l.b16 %v420
    %v491 = vunpack.c.l.b16 %v421
    %v492 = vunpack.c.l.b16 %v422
    %v493 = vunpack.c.l.b16 %v423
    %v494 = vunpack.c.l.b16 %v424
    %v495 = vunpack.c.l.b16 %v425
    %v496 = vunpack.c.l.b16 %v426
    %v497 = vunpack.c.l.b16 %v427
    %v498 = vunpack.c.l.b16 %v428
    %v499 = vunpack.c.l.b16 %v429
    %v500 = vunpack.c.l.b16 %v430
    %v501 = vunpack.c.l.b16 %v431
    %v502 = vpack.c.b16 %v468, %v467
    %v503 = vpack.c.b16 %v470, %v469
    %v504 = vpack.c.b16 %v472, %v471
    %v505 = vpack.c.b16 %v474, %v473
    %v506 = vpack.c.b16 %v476, %v475
    %v507 = vpack.c.b16 %v478, %v477
    %v508 = vpack.c.b16 %v480, %v479
    %v509 = vpack.c.b16 %v482, %v481
    %v510 = vpack.c.b16 %v484, %v483
    %v511 = vpack.c.b16 %v486, %v485
    %v512 = vpack.c.b16 %v488, %v487
    %v513 = vpack.c.b16 %v490, %v489
    %v514 = vpack.c.b16 %v492, %v491
    %v515 = vpack.c.b16 %v494, %v493
    %v516 = vpack.c.b16 %v496, %v495
    %v517 = vpack.c.b16 %v498, %v497
    %v518 = vpack.c.b16 %v500, %v499
    %v519 = vpack.c.b16 %v501, %v501
    %vm537 = vcmask 195584
    %v539 = vsel %vm537, %v396, 0
    %vm541 = vcmask 1043456
    %v543 = vsel %vm541, %v519, 0
    %545 = vmatpush.bf16.msra.mxu0 %v509
    %546 = vmatpush.bf16.msra.mxu0 %v508
    %547 = vmatpush.bf16.msra.mxu0 %v507
    %548 = vmatpush.bf16.msra.mxu0 %v506
    %549 = vmatpush.bf16.msra.mxu0 %v505
    %550 = vmatpush.bf16.msra.mxu0 %v504
    %551 = vmatpush.bf16.msra.mxu0 %v503
    %552 = vmatpush.bf16.msra.mxu0 %v502
    %553 = vmatmul.bf16.gmra.mxu0 %v394
    %v554 = vpop.f32.mrf.mxu0
    %v555 = vadd.f32 0.0, %v554
    %v556 = vpop.f32.mrf.mxu0
    %557 = vdwg.mxu0
    %558 = vmatpush.bf16.msra.mxu0 %v517
    %559 = vmatpush.bf16.msra.mxu0 %v516
    %560 = vmatpush.bf16.msra.mxu0 %v515
    %561 = vmatpush.bf16.msra.mxu0 %v514
    %562 = vmatpush.bf16.msra.mxu0 %v513
    %563 = vmatpush.bf16.msra.mxu0 %v512
    %564 = vmatpush.bf16.msra.mxu0 %v511
    %565 = vmatpush.bf16.msra.mxu0 %v510
    %566 = vmatmul.bf16.gmra.mxu0 %v395
    %v567 = vpop.f32.mrf.mxu0
    %v568 = vadd.f32 %v555, %v567
    %v569 = vpop.f32.mrf.mxu0
    %570 = vdwg.mxu0
    %571 = vmatpush.bf16.msra.mxu0 0
    %572 = vmatpush.bf16.msra.mxu0 0
    %573 = vmatpush.bf16.msra.mxu0 0
    %574 = vmatpush.bf16.msra.mxu0 0
    %575 = vmatpush.bf16.msra.mxu0 0
    %576 = vmatpush.bf16.msra.mxu0 0
    %577 = vmatpush.bf16.msra.mxu0 %v543
    %578 = vmatpush.bf16.msra.mxu0 %v518
    %579 = vmatmul.bf16.gmra.mxu0 %v539
    %v580 = vpop.f32.mrf.mxu0
    %v581 = vadd.f32 %v568, %v580
    %v582 = vpop.f32.mrf.mxu0
    %583 = vdwg.mxu0
    %584 = vst [vmem:[#allocation8] sm:$0x3] %v581
    // Predicated region
    $region26: #{tpu_custom_call.1} parent=1 // pred_check
      _
    $region27: #{tpu_custom_call.1} parent=1 // pred_check_branch
      %586 = sbr.rel (0) target = $region29
    $region28: #{tpu_custom_call.1} parent=1 // pred_region
      %588 = vsyncadd [#allocation4], 0
      %s590 = sshll.u32 [#allocation8], 4
      %s591 = int_to_ptr.vmem [resolvable:$true] %s590
      %s592 = sshll.u32 %s3, 4
      %s593 = int_to_ptr.hbm [resolvable:$true] %s592
      %595 = dma.vmem_to_hbm [thread:$0]  %s591, 32, %s593, [#allocation4]
    $region29: #{tpu_custom_call.1} parent=1 // pred_fallthru
      _
    // Predicated region
    $region30: #{tpu_custom_call.1} parent=1 // pred_check
      _
    $region31: #{tpu_custom_call.1} parent=1 // pred_check_branch
      %597 = sbr.rel (0) target = $region33
    $region32: #{tpu_custom_call.1} parent=1 // pred_region
      %599 = dma.done [#allocation4], 32
    $region33: #{tpu_custom_call.1} parent=1 // pred_fallthru
      _
    %600 = vsyncpa [#allocation3], 1
    %601 = vsyncpa [#allocation6], 1
    %602 = vsyncpa [#allocation4], 1

</llo_original>
